<compile_context>
chip_gen: v7x
topology: tpu7x:2x2x1
jax: 0.10.0
libtpu: 0.0.40
codegen_flags: <defaults>
</compile_context>

<pallas_src>
from functools import partial

import jax
import jax.numpy as jnp
from jax.experimental import pallas as pl
from jax.experimental.pallas import tpu as pltpu


def _patch_kernel_aligned(z_ref, o_ref, *, q, patch_len, d_model):
    """win_size % patch_len == 0 path.

    z_ref: (Bt, q, patch_len*d_model)   -- input viewed patch-major (lane-dense)
    o_ref: (Bt, q + 1, patch_len*d_model)
    """
    zfull = z_ref[...]
    # Patches 0..q-1: single whole-slab copy (unmasked, lane-dense store).
    o_ref[:, :q, :] = zfull
    # Patch q: last time step replicated patch_len times (ReplicationPad1d rows).
    last_row = zfull[:, q - 1:q, (patch_len - 1) * d_model:]      # (Bt, 1, d_model)
    o_ref[:, q:, :] = jnp.tile(last_row, (1, 1, patch_len))       # (Bt, 1, patch_len*d_model)


def _patch_kernel_rows(z_ref, o_ref, *, win_size, pad_rows):
    """General path (win_size % patch_len != 0).

    z_ref: (Bt, win_size, d_model)
    o_ref: (Bt, win_size + pad_rows, d_model)  -- rows layout; wrapper reshape
           to (B, patch_num, patch_len*d_model) is a free contiguous reshape.
    """
    zfull = z_ref[...]
    o_ref[:, :win_size, :] = zfull                                 # slab copy
    last = zfull[:, win_size - 1:win_size, :]                      # (Bt, 1, d_model)
    o_ref[:, win_size:, :] = jnp.broadcast_to(
        last, (last.shape[0], pad_rows, last.shape[2]))            # replicated pad rows


def _choose_batch_tile(B, bytes_per_batch, vmem_budget_bytes=8 * 1024 * 1024):
    """Largest divisor of B such that double-buffered (in+out) tiles fit a
    conservative VMEM budget, while keeping >= 2 grid steps whenever B >= 2
    so both v7x TensorCores (and megacore on v5e/v6e) get work."""
    cap = max(1, vmem_budget_bytes // max(1, 2 * bytes_per_batch))
    if B >= 2:
        cap = min(cap, max(1, B // 2))
    best = 1
    for bt in range(1, B + 1):
        if B % bt == 0 and bt <= cap:
            best = bt
    return best


def patch_time_forward(z, *, win_size, patch_len):
    """z: (B, win_size, d_model) -> (B, patch_num, patch_len * d_model)."""
    B, W, d_model = z.shape
    assert W == win_size
    stride = patch_len
    # Integer arithmetic (matches the module's int(float) for positive sizes).
    patch_num = (win_size - patch_len) // stride + 2
    out_feat = patch_len * d_model
    itemsize = jnp.dtype(z.dtype).itemsize

    if win_size % patch_len == 0:
        # ---- lane-dense main path: kernel emits the final layout directly ----
        q = win_size // patch_len                      # == patch_num - 1
        z_view = z.reshape(B, q, out_feat)             # free contiguous reshape
        bytes_per_batch = (q + patch_num) * out_feat * itemsize
        Bt = _choose_batch_tile(B, bytes_per_batch)
        kernel = partial(_patch_kernel_aligned, q=q, patch_len=patch_len,
                         d_model=d_model)
        return pl.pallas_call(
            kernel,
            out_shape=jax.ShapeDtypeStruct((B, patch_num, out_feat), z.dtype),
            grid_spec=pltpu.PrefetchScalarGridSpec(
                num_scalar_prefetch=0,
                grid=(B // Bt,),
                in_specs=[pl.BlockSpec((Bt, q, out_feat), lambda b: (b, 0, 0))],
                out_specs=pl.BlockSpec((Bt, patch_num, out_feat),
                                       lambda b: (b, 0, 0)),
            ),
            compiler_params=pltpu.CompilerParams(
                dimension_semantics=("parallel",)),
        )(z_view)

    # ---- general fallback: rows layout + free reshape in the wrapper ----
    P = patch_num * patch_len                          # padded row count (> win_size)
    pad_rows = P - win_size
    bytes_per_batch = (win_size + P) * d_model * itemsize
    Bt = _choose_batch_tile(B, bytes_per_batch)
    kernel = partial(_patch_kernel_rows, win_size=win_size, pad_rows=pad_rows)
    rows = pl.pallas_call(
        kernel,
        out_shape=jax.ShapeDtypeStruct((B, P, d_model), z.dtype),
        grid_spec=pltpu.PrefetchScalarGridSpec(
            num_scalar_prefetch=0,
            grid=(B // Bt,),
            in_specs=[pl.BlockSpec((Bt, win_size, d_model), lambda b: (b, 0, 0))],
            out_specs=pl.BlockSpec((Bt, P, d_model), lambda b: (b, 0, 0)),
        ),
        compiler_params=pltpu.CompilerParams(dimension_semantics=("parallel",)),
    )(z)
    # (B, P, d_model) == (B, patch_num, patch_len, d_model): contiguous reshape.
    return rows.reshape(B, patch_num, out_feat)


def make_patch_time_params(win_size, patch_len, d_model, d_ff):
    """Deterministic init of the module's parameters (self.W is NOT used in forward)."""
    key = jax.random.PRNGKey(42)
    kw, kb = jax.random.split(key)
    in_feat = patch_len * d_model
    bound = 1.0 / jnp.sqrt(in_feat)
    W_weight = jax.random.uniform(kw, (d_ff, in_feat), jnp.float32, -bound, bound)
    W_bias = jax.random.uniform(kb, (d_ff,), jnp.float32, -bound, bound)
    return {"W_weight": W_weight, "W_bias": W_bias}


def _reference(z, win_size, patch_len):
    """Pure-JAX reference of the PyTorch forward."""
    B, W, d_model = z.shape
    stride = patch_len
    patch_num = int((win_size - patch_len) / stride + 1) + 1
    zt = jnp.transpose(z, (0, 2, 1))                               # (B, d_model, win_size)
    zp = jnp.concatenate(
        [zt, jnp.repeat(zt[:, :, -1:], stride, axis=-1)], axis=-1)  # ReplicationPad1d((0, stride))
    idx = jnp.arange(patch_num)[:, None] * stride + jnp.arange(patch_len)[None, :]
    unf = zp[:, :, idx]                                            # (B, d_model, patch_num, patch_len)
    return jnp.transpose(unf, (0, 2, 3, 1)).reshape(B, patch_num, -1)


if __name__ == "__main__":
    B, win_size, patch_len, d_model, d_ff = 2, 16, 4, 8, 32

    params = make_patch_time_params(win_size, patch_len, d_model, d_ff)  # W unused in forward

    key = jax.random.PRNGKey(0)
    z = jax.random.normal(key, (B, win_size, d_model), dtype=jnp.float32)

    # Main (aligned, lane-dense) path.
    out = jax.block_until_ready(
        patch_time_forward(z, win_size=win_size, patch_len=patch_len))
    ref = _reference(z, win_size, patch_len)
    assert out.shape == ref.shape, (out.shape, ref.shape)
    assert jnp.allclose(out, ref, atol=1e-6, rtol=1e-6), "mismatch vs reference (aligned path)"

    # Non-divisible win_size exercises the general rows-layout path and the
    # replication-pad edge case called out in the review.
    win2 = 18
    z2 = jax.random.normal(jax.random.PRNGKey(1), (B, win2, d_model), dtype=jnp.float32)
    out2 = jax.block_until_ready(
        patch_time_forward(z2, win_size=win2, patch_len=patch_len))
    ref2 = _reference(z2, win2, patch_len)
    assert out2.shape == ref2.shape, (out2.shape, ref2.shape)
    assert jnp.allclose(out2, ref2, atol=1e-6, rtol=1e-6), "mismatch vs reference (rows path)"

    print("KERNEL_OK")
</pallas_src>

<mosaic_0001>
module attributes {stable_mosaic.version = 11 : i64} {
  func.func @_patch_kernel_aligned(%arg0: i32, %arg1: memref<1x4x32xf32, #tpu.memory_space<vmem>>, %arg2: memref<1x5x32xf32, #tpu.memory_space<vmem>>) attributes {dimension_semantics = [#tpu.dimension_semantics<parallel>], iteration_bounds = array<i64: 2>, scalar_prefetch = 0 : i64, scratch_operands = 0 : i64, tpu.core_type = #tpu.core_type<tc>, window_params = [{transform_indices = @transform_0, window_bounds = array<i64: 1, 4, 32>}, {transform_indices = @transform_1, window_bounds = array<i64: 1, 5, 32>}]} {
    %c0 = arith.constant 0 : index
    %c0_0 = arith.constant 0 : index
    %c0_1 = arith.constant 0 : index
    %0 = vector.load %arg1[%c0, %c0_0, %c0_1] : memref<1x4x32xf32, #tpu.memory_space<vmem>>, vector<1x4x32xf32>
    %c0_2 = arith.constant 0 : index
    %c0_3 = arith.constant 0 : index
    %c0_4 = arith.constant 0 : index
    %1 = vector.load %arg2[%c0_2, %c0_3, %c0_4] : memref<1x5x32xf32, #tpu.memory_space<vmem>>, vector<1x4x32xf32>
    tpu.vector_store %arg2[%c0_2, %c0_3, %c0_4], %0 {strides = array<i32>} : memref<1x5x32xf32, #tpu.memory_space<vmem>>, vector<1x4x32xf32>,
    %2 = vector.extract_strided_slice %0 {offsets = [0, 3, 24], sizes = [1, 1, 8], strides = [1, 1, 1]} : vector<1x4x32xf32> to vector<1x1x8xf32>
    %3 = tpu.concatenate %2, %2, %2, %2 in 2 : vector<1x1x8xf32>, vector<1x1x8xf32>, vector<1x1x8xf32>, vector<1x1x8xf32> -> vector<1x1x32xf32>
    %c0_5 = arith.constant 0 : index
    %c4 = arith.constant 4 : index
    %c0_6 = arith.constant 0 : index
    %4 = vector.load %arg2[%c0_5, %c4, %c0_6] : memref<1x5x32xf32, #tpu.memory_space<vmem>>, vector<1x1x32xf32>
    tpu.vector_store %arg2[%c0_5, %c4, %c0_6], %3 {strides = array<i32>} : memref<1x5x32xf32, #tpu.memory_space<vmem>>, vector<1x1x32xf32>,
    return
  }
  func.func @transform_0(%arg0: i32) -> (i32, i32, i32) {
    %c0_i32 = arith.constant 0 : i32
    %c0_i32_0 = arith.constant 0 : i32
    %c0_i32_1 = arith.constant 0 : i32
    return %arg0, %c0_i32, %c0_i32_0 : i32, i32, i32
  }
  func.func @transform_1(%arg0: i32) -> (i32, i32, i32) {
    %c0_i32 = arith.constant 0 : i32
    %c0_i32_0 = arith.constant 0 : i32
    %c0_i32_1 = arith.constant 0 : i32
    return %arg0, %c0_i32, %c0_i32_0 : i32, i32, i32
  }
}

</mosaic_0001>

<llo_original>
// kernel: tpu_custom_call.1
$region0: #{tpu_custom_call.1}
  #allocation0 [shape = 'u32[]', space=smem, size = 0x4, offset = 0x4, fixed_abs, tag = 'smem constant byte address 0x4 - core index']
  #allocation1 [shape = 'u32[144,128]{1,0:T(1,128)}', space=vmem, size = 0x12000, scoped, tag = 'internal scratch']
  %s0 = inlined_call_operand.hbm [shape: f32[2,4,32], index: 0, kind: input, shape index: {}]
  %s1 = inlined_call_operand.vmem [shape: f32[2,5,32], index: 1, kind: output, shape index: {}]
  %s2 = sld [smem:[#allocation0]]
  $region41: #{tpu_custom_call.1} parent=0
    _
  %s4 = ssub.s32 1, %s2
  %s5 = scalar_select 0, %s4, %s2
  $region1: #{tpu_custom_call.1} parent=0
    #allocation2 [shape = 'u8[4096]{0}', space=vmem, size = 0x1000, scoped, tag = 'input window, operand 0']
    #allocation3 [shape = 's32[2]{0}', space=sflag, size = 0x8, scoped, tag = 'scoped memory for tpu_custom_call.1']
    %6 = vsyncpa [#allocation3], 0
    %s7 = scalar_lea.sflag [#allocation3], 1
    %8 = vsyncpa %s7, 0
    loop: start=0, step=1, limit=4
    $region2: #{tpu_custom_call.1} parent=1 // loop_pre_header
      _
    $region3: #{tpu_custom_call.1} parent=1 // loop_header
      %s10 = sphi 0, %s14
      %p11 = scmp.ge.s32.totalorder %s10, 4
      %s20 = sphi 0, %s22
      %s23 = sphi 0, %s20
      %s24 = sphi 0, %s23
      %s40 = sphi 0, %s24
      %s46 = sphi 0, %s48
      %s49 = sphi 0, %s46
      %s50 = sphi 0, %s49
      %s66 = sphi 0, %s50
    $region4: #{tpu_custom_call.1} parent=1 // loop_header_branch
      %13 = sbr.rel (%p11) target = $region8
    $region5: #{tpu_custom_call.1} parent=1 // loop_body
      %s15 = ssub.s32 %s10, 1
      %s16 = ssub.s32 %s10, 2
      %s17 = sadd.s32 %s10, 1
      %s18 = ssub.s32 %s10, %s17
      %p19 = scmp.eq.s32.totalorder %s18, 0
      %s21 = sadd.s32 %s20, 1
      %s22 = scalar_select %p19, %s20, %s21
      %p25 = pneg %p19
      %p26 = scmp.eq.s32.totalorder %s10, 1
      %p27 = por %p25, %p26
      %p28 = scmp.ne.s32.totalorder %s20, %s23
      %p29 = scmp.eq.s32.totalorder %s10, 0
      %p30 = por %p28, %p29
      %p31 = scmp.ne.s32.totalorder %s20, %s23
      %p32 = scmp.eq.s32.totalorder %s15, 1
      %p33 = por %p31, %p32
      %p34 = scmp.ne.s32.totalorder %s23, %s24
      %p35 = scmp.eq.s32.totalorder %s15, 0
      %p36 = por %p34, %p35
      %p37 = scmp.ne.s32.totalorder %s23, %s24
      %p38 = scmp.eq.s32.totalorder %s16, 1
      %p39 = por %p37, %p38
      %p41 = scmp.ne.s32.totalorder %s24, %s40
      %p42 = scmp.eq.s32.totalorder %s16, 0
      %p43 = por %p41, %p42
      %s44 = ssub.s32 %s10, %s17
      %p45 = scmp.eq.s32.totalorder %s44, 0
      %s47 = sadd.s32 %s46, 1
      %s48 = scalar_select %p45, %s46, %s47
      %p51 = pneg %p45
      %p52 = scmp.eq.s32.totalorder %s10, 1
      %p53 = por %p51, %p52
      %p54 = scmp.ne.s32.totalorder %s46, %s49
      %p55 = scmp.eq.s32.totalorder %s10, 0
      %p56 = por %p54, %p55
      %p57 = scmp.ne.s32.totalorder %s46, %s49
      %p58 = scmp.eq.s32.totalorder %s15, 1
      %p59 = por %p57, %p58
      %p60 = scmp.ne.s32.totalorder %s49, %s50
      %p61 = scmp.eq.s32.totalorder %s15, 0
      %p62 = por %p60, %p61
      %p63 = scmp.ne.s32.totalorder %s49, %s50
      %p64 = scmp.eq.s32.totalorder %s16, 1
      %p65 = por %p63, %p64
      %p67 = scmp.ne.s32.totalorder %s50, %s66
      %p68 = scmp.eq.s32.totalorder %s16, 0
      %p69 = por %p67, %p68
      %p70 = scmp.le.s32.totalorder 1, %s10
      %p71 = scmp.lt.s32.totalorder %s10, 3
      %p72 = pnand %p70, %p71
      %p73 = pneg %p72
      // Predicated region
      $region9: #{tpu_custom_call.1} parent=5 // pred_check
        _
      $region10: #{tpu_custom_call.1} parent=5 // pred_check_branch
        %75 = sbr.rel (%p72) target = $region12
      $region11: #{tpu_custom_call.1} parent=5 // pred_region
        %s76 = ssub.s32 %s10, 1
      $region12: #{tpu_custom_call.1} parent=5 // pred_fallthru
        _
      %p77 = scmp.lt.s32.totalorder %s10, 2
      // Predicated region
      $region13: #{tpu_custom_call.1} parent=5 // pred_check
        %p78 = pneg %p77
      $region14: #{tpu_custom_call.1} parent=5 // pred_check_branch
        %80 = sbr.rel (%p78) target = $region16
      $region15: #{tpu_custom_call.1} parent=5 // pred_region
        // Predicated region
        $region17: #{tpu_custom_call.1} parent=15 // pred_check
          %p81 = pneg %p30
        $region18: #{tpu_custom_call.1} parent=15 // pred_check_branch
          %83 = sbr.rel (%p81) target = $region20
        $region19: #{tpu_custom_call.1} parent=15 // pred_region
          %s84 = sand.u32 %s20, 1
          %s85 = scalar_lea.sflag [#allocation3], %s84
          %s86 = sand.u32 %s20, 1
          %s87 = smul.addr %s86, 4
          %s88 = scalar_lea.vmem [#allocation2], %s87
          %s90 = ssub.s32 64, 64
          %91 = vsyncadd %s85, %s90
          %s92 = smul.addr %s10, 64
          %s93 = scalar_lea.hbm %s0, %s92
          %s95 = sshll.u32 %s88, 4
          %s96 = int_to_ptr.vmem [resolvable:$true] %s95
          %98 = dma.hbm_to_vmem [thread:$0]  %s93, 64, %s96, %s85
        $region20: #{tpu_custom_call.1} parent=15 // pred_fallthru
          _
      $region16: #{tpu_custom_call.1} parent=5 // pred_fallthru
        _
      %p99 = scmp.le.s32.totalorder 1, %s10
      %p100 = scmp.lt.s32.totalorder %s10, 3
      %p101 = pnand %p99, %p100
      %p102 = pneg %p101
      // Predicated region
      $region21: #{tpu_custom_call.1} parent=5 // pred_check
        _
      $region22: #{tpu_custom_call.1} parent=5 // pred_check_branch
        %104 = sbr.rel (%p101) target = $region24
      $region23: #{tpu_custom_call.1} parent=5 // pred_region
        %s105 = ssub.s32 %s10, 1
        %s106 = sand.u32 %s23, 1
        %s107 = scalar_lea.sflag [#allocation3], %s106
        %s108 = sand.u32 %s23, 1
        %s109 = smul.addr %s108, 4
        %s110 = scalar_lea.vmem [#allocation2], %s109
        // Predicated region
        $region25: #{tpu_custom_call.1} parent=23 // pred_check
          %p111 = pneg %p36
        $region26: #{tpu_custom_call.1} parent=23 // pred_check_branch
          %113 = sbr.rel (%p111) target = $region28
        $region27: #{tpu_custom_call.1} parent=23 // pred_region
          %114 = dma.done %s107, 64
        $region28: #{tpu_custom_call.1} parent=23 // pred_fallthru
          _
        %s115 = sand.u32 %s23, 1
        %s116 = scalar_lea.sflag [#allocation3], %s115
        %s117 = sand.u32 %s23, 1
        %s118 = smul.addr %s117, 4
        %s119 = scalar_lea.vmem [#allocation2], %s118
        %p120 = pneg %p36
        %p121 = pneg %p33
        %p122 = pneg %p62
        %p123 = pneg %p59
        %p124 = scmp.lt.s32.totalorder %s15, 1
        %s125 = scalar_select %p124, %s15, 1
        %s126 = smul.addr %s125, 8
        %s127 = scalar_lea.vmem %s1, %s126
        %p128 = scmp.lt.s32.totalorder %s15, 1
        %s129 = scalar_select %p128, %s15, 1
        %s130 = smul.addr %s129, 8
        %s131 = scalar_lea.vmem %s1, %s130
        %v132 = vld [vmem:[%s110] sm:$0xf]
        %vm133 = vcmask 257024
        %134 = vst.msk [vmem:[%s131] sm:$0xf] %vm133, %v132
        %136 = vrot.lane.b32.xlu0 %v132, 104
        %v137 = vpop.permute.xlu0 %136
        %139 = vrot.lane.b32.xlu0 %v132, 112
        %v140 = vpop.permute.xlu0 %139
        %142 = vrot.lane.b32.xlu0 %v132, 120
        %v143 = vpop.permute.xlu0 %142
        %vm145 = vcmask 64512
        %v146 = vsel %vm145, %v137, %v140
        %vm147 = vcmask 130048
        %v148 = vsel %vm147, %v146, %v143
        %vm149 = vcmask 195584
        %v150 = vsel %vm149, %v148, %v132
        %vm151 = vcmask 257027
        %152 = vst.msk [vmem:[%s131 + $0x1] sm:$0x8] %vm151, %v150
        %p153 = scmp.lt.s32.totalorder %s15, 1
        %s154 = scalar_select %p153, %s15, 1
        %s155 = smul.addr %s154, 8
        %s156 = scalar_lea.vmem %s1, %s155
        // Predicated region
        $region29: #{tpu_custom_call.1} parent=23 // pred_check
          %p157 = pneg %p59
        $region30: #{tpu_custom_call.1} parent=23 // pred_check_branch
          %159 = sbr.rel (%p157) target = $region32
        $region31: #{tpu_custom_call.1} parent=23 // pred_region
          _
        $region32: #{tpu_custom_call.1} parent=23 // pred_fallthru
          _
      $region24: #{tpu_custom_call.1} parent=5 // pred_fallthru
        _
      %p160 = scmp.le.s32.totalorder 2, %s10
      // Predicated region
      $region33: #{tpu_custom_call.1} parent=5 // pred_check
        %p161 = pneg %p160
      $region34: #{tpu_custom_call.1} parent=5 // pred_check_branch
        %163 = sbr.rel (%p161) target = $region36
      $region35: #{tpu_custom_call.1} parent=5 // pred_region
        %s164 = ssub.s32 %s10, 2
        // Predicated region
        $region37: #{tpu_custom_call.1} parent=35 // pred_check
          %p165 = pneg %p65
        $region38: #{tpu_custom_call.1} parent=35 // pred_check_branch
          %167 = sbr.rel (%p165) target = $region40
        $region39: #{tpu_custom_call.1} parent=35 // pred_region
          %p168 = scmp.lt.s32.totalorder %s16, 1
          %s169 = scalar_select %p168, %s16, 1
          %s170 = smul.addr %s169, 8
          %s171 = scalar_lea.vmem %s1, %s170
        $region40: #{tpu_custom_call.1} parent=35 // pred_fallthru
          _
      $region36: #{tpu_custom_call.1} parent=5 // pred_fallthru
        _
    $region6: #{tpu_custom_call.1} parent=1 // loop_footer
      %s14 = sadd.s32 1, %s10
    $region7: #{tpu_custom_call.1} parent=1 // loop_footer_branch
      %9 = sbr.rel target = $region3
    $region8: #{tpu_custom_call.1} parent=1 // loop_exit
      _
    %172 = vsyncpa [#allocation3], 1
    %s173 = scalar_lea.sflag [#allocation3], 1
    %174 = vsyncpa %s173, 1

</llo_original>
